<compile_context>
chip_gen: v5e
topology: v5e:2x2
jax: 0.10.0
libtpu: 0.0.40
codegen_flags: <defaults>
</compile_context>

<pallas_src>
import functools

import jax
import jax.numpy as jnp
from jax.experimental import pallas as pl
from jax.experimental.pallas import tpu as pltpu


def _round_up(n, m):
    return (n + m - 1) // m * m


def _lora_qkv_kernel(x_ref, w_ref, a_ref, bias_ref, b_ref, o_ref, *,
                     dim, compute_dtype):
    # x_ref:    (tm, dim)            native dtype (cast to compute_dtype here)
    # w_ref:    (dim, 3*dim)         frozen W_qkv^T            (compute_dtype)
    # a_ref:    (dim, a_pad)         [A_q^T | A_v^T | 0]       (compute_dtype)
    # bias_ref: (1, 3*dim)           f32
    # b_ref:    (a_pad, 2*dim)       rows [:r] -> B_q^T in cols [:dim],
    #                                rows [r:2r] -> B_v^T in cols [dim:]
    # o_ref:    (tm, 3*dim)          x.dtype
    two_dim = 2 * dim
    x = x_ref[...].astype(compute_dtype)

    # Frozen qkv projection, f32 accumulation on the MXU, + bias.
    qkv = jnp.dot(x, w_ref[...], preferred_element_type=jnp.float32)
    qkv = qkv + bias_ref[...]

    # Both LoRA-A projections in one MXU pass (lane-padded N).
    z = jnp.dot(x, a_ref[...], preferred_element_type=jnp.float32)

    # Merged LoRA-B: (tm, 2*dim) correction; [:, :dim] -> q, [:, dim:] -> v.
    delta = jnp.dot(z.astype(compute_dtype), b_ref[...],
                    preferred_element_type=jnp.float32)

    # Epilogue in f32; three stores (lane-aligned when dim % 128 == 0).
    o_ref[:, :dim] = (qkv[:, :dim] + delta[:, :dim]).astype(o_ref.dtype)
    o_ref[:, dim:two_dim] = qkv[:, dim:two_dim].astype(o_ref.dtype)
    o_ref[:, two_dim:] = (qkv[:, two_dim:] + delta[:, dim:]).astype(o_ref.dtype)


def prepare_lora_qkv_params(w_qkv, b_qkv, w_aq, w_bq, w_av, w_bv, *,
                            compute_dtype=jnp.bfloat16):
    """One-time parameter prep (hoist out of the per-call hot path).

    PyTorch nn.Linear convention: w_qkv (3*dim, dim), w_aq/w_av (r, dim),
    w_bq/w_bv (dim, r). Weights are relaid and cast to `compute_dtype`
    (default bf16 -> native MXU path on v5e/v6e/v7x).
    """
    three_dim, dim = w_qkv.shape
    assert three_dim == 3 * dim
    r = w_aq.shape[0]
    dt = jnp.dtype(compute_dtype)

    w_t = jnp.transpose(w_qkv).astype(dt)                 # (dim, 3*dim)

    # LoRA-A, lane-padded so z stays lane-dense.
    a_pad = _round_up(2 * r, 128)
    a_fused = jnp.zeros((dim, a_pad), dt)
    a_fused = a_fused.at[:, :r].set(jnp.transpose(w_aq).astype(dt))
    a_fused = a_fused.at[:, r:2 * r].set(jnp.transpose(w_av).astype(dt))

    # Merged LoRA-B over 2*dim only (no dead middle third).
    b_fused = jnp.zeros((a_pad, 2 * dim), dt)
    b_fused = b_fused.at[:r, :dim].set(jnp.transpose(w_bq).astype(dt))
    b_fused = b_fused.at[r:2 * r, dim:].set(jnp.transpose(w_bv).astype(dt))

    bias = b_qkv.reshape(1, three_dim).astype(jnp.float32)

    return {"w_t": w_t, "a_fused": a_fused, "b_fused": b_fused, "bias": bias,
            "dim": dim, "r": r, "compute_dtype": dt}


def lora_qkv_apply(x, params, *, tm=512):
    """x: (B, H, W, dim) channels-last; params from prepare_lora_qkv_params.

    Output dtype == x.dtype (matches the reference module's precision policy).
    """
    B, H, W, dim = x.shape
    assert dim == params["dim"]
    three_dim, two_dim = 3 * dim, 2 * dim
    w_t, a_fused, b_fused, bias = (params["w_t"], params["a_fused"],
                                   params["b_fused"], params["bias"])
    a_pad = a_fused.shape[1]
    cdt = params["compute_dtype"]

    # No dtype cast / padding here: reshape is free, x streams in its native
    # dtype and is cast per-tile inside the kernel.
    x2d = x.reshape(B * H * W, dim)
    M = x2d.shape[0]
    out_dtype = x.dtype

    x_item = jnp.dtype(x.dtype).itemsize
    out_item = jnp.dtype(out_dtype).itemsize
    weight_bytes = (w_t.size * w_t.dtype.itemsize
                    + a_fused.size * a_fused.dtype.itemsize
                    + b_fused.size * b_fused.dtype.itemsize
                    + bias.size * bias.dtype.itemsize)

    # Physical VMEM of the device (64 MiB/TC on v7x, 128 MiB on v5e/v6e).
    try:
        phys_vmem = int(getattr(pltpu.get_tpu_info(), "vmem_capacity_bytes",
                                64 * 1024 * 1024))
    except Exception:  # pragma: no cover - conservative fallback
        phys_vmem = 64 * 1024 * 1024
    headroom = 4 * 1024 * 1024

    def _budget(tmv):
        io = 2 * tmv * (dim * x_item + three_dim * out_item)      # dbl-buffered
        scratch = 4 * tmv * (three_dim + a_pad + two_dim) + (1 << 20)
        return weight_bytes + io + scratch

    # Token-tile size: no bigger than the token count, shrink if VMEM-tight.
    tm_eff = max(8, min(tm, _round_up(M, 8)))
    while tm_eff > 128 and _budget(tm_eff) > phys_vmem - headroom:
        tm_eff = max(128, tm_eff // 2)
    grid_m = pl.cdiv(M, tm_eff)

    vmem_limit = int(min(phys_vmem - headroom,
                         max(_budget(tm_eff), 32 * 1024 * 1024)))
    vmem_limit = max(vmem_limit, 1 << 20)

    flops = 2 * M * dim * (three_dim + a_pad) + 2 * M * a_pad * two_dim
    bytes_accessed = (M * dim * x_item + M * three_dim * out_item
                      + weight_bytes)

    def invariant(shape):
        # Grid-invariant operand: constant index_map, single-buffered.
        return pl.BlockSpec(shape, lambda i: (0,) * len(shape),
                            pipeline_mode=pl.Buffered(1))

    kernel = functools.partial(_lora_qkv_kernel, dim=dim, compute_dtype=cdt)

    out2d = pl.pallas_call(
        kernel,
        out_shape=jax.ShapeDtypeStruct((M, three_dim), out_dtype),
        grid_spec=pltpu.PrefetchScalarGridSpec(
            num_scalar_prefetch=0,
            grid=(grid_m,),
            in_specs=[
                pl.BlockSpec((tm_eff, dim), lambda i: (i, 0)),  # x (streamed)
                invariant((dim, three_dim)),                    # W_qkv^T
                invariant((dim, a_pad)),                        # [A_q^T|A_v^T]
                invariant((1, three_dim)),                      # bias (f32)
                invariant((a_pad, two_dim)),                    # merged LoRA-B
            ],
            out_specs=pl.BlockSpec((tm_eff, three_dim), lambda i: (i, 0)),
        ),
        compiler_params=pltpu.CompilerParams(
            dimension_semantics=("parallel",),
            vmem_limit_bytes=vmem_limit,
        ),
        cost_estimate=pl.CostEstimate(flops=flops, transcendentals=0,
                                      bytes_accessed=bytes_accessed),
    )(x2d, w_t, a_fused, bias, b_fused)

    return out2d.reshape(B, H, W, three_dim)


def lora_qkv(x, w_qkv, b_qkv, w_aq, w_bq, w_av, w_bv, *, tm=512,
             compute_dtype=jnp.bfloat16):
    """Convenience wrapper. In real use, call prepare_lora_qkv_params once at
    init and lora_qkv_apply per step (the prep does HBM-level relayout)."""
    params = prepare_lora_qkv_params(w_qkv, b_qkv, w_aq, w_bq, w_av, w_bv,
                                     compute_dtype=compute_dtype)
    return lora_qkv_apply(x, params, tm=tm)


def _reference(x, w_qkv, b_qkv, w_aq, w_bq, w_av, w_bv):
    dim = x.shape[-1]
    qkv = jnp.einsum("bhwc,oc->bhwo", x, w_qkv) + b_qkv
    new_q = jnp.einsum("bhwr,or->bhwo",
                       jnp.einsum("bhwc,rc->bhwr", x, w_aq), w_bq)
    new_v = jnp.einsum("bhwr,or->bhwo",
                       jnp.einsum("bhwc,rc->bhwr", x, w_av), w_bv)
    qkv = qkv.at[..., :dim].add(new_q)
    qkv = qkv.at[..., -dim:].add(new_v)
    return qkv


if __name__ == "__main__":
    # Small shapes consistent with the module (SAM image-encoder style tokens).
    B, H, W, dim, r = 2, 8, 8, 32, 4

    key = jax.random.PRNGKey(0)
    kx, kw, kb, ka1, kb1, ka2, kb2 = jax.random.split(key, 7)

    x = jax.random.normal(kx, (B, H, W, dim), dtype=jnp.float32)

    # nn.Linear weight convention: (out_features, in_features).
    w_qkv = jax.random.normal(kw, (3 * dim, dim), dtype=jnp.float32) * 0.05
    b_qkv = jax.random.normal(kb, (3 * dim,), dtype=jnp.float32) * 0.01
    w_aq = jax.random.normal(ka1, (r, dim), dtype=jnp.float32) * 0.05
    w_bq = jax.random.normal(kb1, (dim, r), dtype=jnp.float32) * 0.05
    w_av = jax.random.normal(ka2, (r, dim), dtype=jnp.float32) * 0.05
    w_bv = jax.random.normal(kb2, (dim, r), dtype=jnp.float32) * 0.05

    ref = _reference(x, w_qkv, b_qkv, w_aq, w_bq, w_av, w_bv)

    # 1) Default (bf16 MXU) path: production precision policy, f32 output
    #    dtype matching the input; looser tolerance vs the f32 reference.
    out_bf16 = lora_qkv(x, w_qkv, b_qkv, w_aq, w_bq, w_av, w_bv)
    out_bf16 = jax.block_until_ready(out_bf16)
    assert out_bf16.shape == (B, H, W, 3 * dim)
    assert out_bf16.dtype == x.dtype
    assert jnp.allclose(out_bf16, ref, atol=5e-2, rtol=5e-2)

    # 2) f32 compute path (exercises the non-default precision + ragged
    #    token-tile handling without any wrapper-side pad/slice).
    out_f32 = lora_qkv(x, w_qkv, b_qkv, w_aq, w_bq, w_av, w_bv,
                       compute_dtype=jnp.float32)
    out_f32 = jax.block_until_ready(out_f32)
    assert out_f32.shape == (B, H, W, 3 * dim)
    assert jnp.allclose(out_f32, ref, atol=2e-4, rtol=2e-4)

    print("KERNEL_OK")
</pallas_src>

<mosaic_0001>
module attributes {stable_mosaic.version = 11 : i64} {
  func.func @_lora_qkv_kernel(%arg0: i32, %arg1: memref<128x32xf32, #tpu.memory_space<vmem>>, %arg2: memref<32x96xbf16, #tpu.memory_space<vmem>>, %arg3: memref<32x128xbf16, #tpu.memory_space<vmem>>, %arg4: memref<1x96xf32, #tpu.memory_space<vmem>>, %arg5: memref<128x64xbf16, #tpu.memory_space<vmem>>, %arg6: memref<128x96xf32, #tpu.memory_space<vmem>>) attributes {dimension_semantics = [#tpu.dimension_semantics<parallel>], iteration_bounds = array<i64: 1>, scalar_prefetch = 0 : i64, scratch_operands = 0 : i64, tpu.core_type = #tpu.core_type<tc>, window_params = [{transform_indices = @transform_0, window_bounds = array<i64: 128, 32>}, {pipeline_mode = #tpu.pipeline_mode<synchronous>, transform_indices = @transform_1, window_bounds = array<i64: 32, 96>}, {pipeline_mode = #tpu.pipeline_mode<synchronous>, transform_indices = @transform_2, window_bounds = array<i64: 32, 128>}, {pipeline_mode = #tpu.pipeline_mode<synchronous>, transform_indices = @transform_3, window_bounds = array<i64: 1, 96>}, {pipeline_mode = #tpu.pipeline_mode<synchronous>, transform_indices = @transform_4, window_bounds = array<i64: 128, 64>}, {transform_indices = @transform_5, window_bounds = array<i64: 128, 96>}]} {
    %c0 = arith.constant 0 : index
    %c0_0 = arith.constant 0 : index
    %0 = vector.load %arg1[%c0, %c0_0] : memref<128x32xf32, #tpu.memory_space<vmem>>, vector<128x32xf32>
    %1 = arith.truncf %0 : vector<128x32xf32> to vector<128x32xbf16>
    %c0_1 = arith.constant 0 : index
    %c0_2 = arith.constant 0 : index
    %2 = vector.load %arg2[%c0_1, %c0_2] : memref<32x96xbf16, #tpu.memory_space<vmem>>, vector<32x96xbf16>
    %cst = arith.constant dense<0.000000e+00> : vector<128x96xf32>
    %3 = tpu.matmul %1, %2, %cst {dimension_numbers = #tpu.dot_dimension_numbers<[1], [0], [0], [1], [0, 0, 1, 1], [], []>} : vector<128x32xbf16>, vector<32x96xbf16>, vector<128x96xf32> -> vector<128x96xf32>
    %c0_3 = arith.constant 0 : index
    %c0_4 = arith.constant 0 : index
    %4 = vector.load %arg4[%c0_3, %c0_4] : memref<1x96xf32, #tpu.memory_space<vmem>>, vector<1x96xf32>
    %5 = vector.broadcast %4 : vector<1x96xf32> to vector<128x96xf32>
    %6 = arith.addf %3, %5 : vector<128x96xf32>
    %c0_5 = arith.constant 0 : index
    %c0_6 = arith.constant 0 : index
    %7 = vector.load %arg3[%c0_5, %c0_6] : memref<32x128xbf16, #tpu.memory_space<vmem>>, vector<32x128xbf16>
    %cst_7 = arith.constant dense<0.000000e+00> : vector<128x128xf32>
    %8 = tpu.matmul %1, %7, %cst_7 {dimension_numbers = #tpu.dot_dimension_numbers<[1], [0], [0], [1], [0, 0, 1, 1], [], []>} : vector<128x32xbf16>, vector<32x128xbf16>, vector<128x128xf32> -> vector<128x128xf32>
    %9 = arith.truncf %8 : vector<128x128xf32> to vector<128x128xbf16>
    %c0_8 = arith.constant 0 : index
    %c0_9 = arith.constant 0 : index
    %10 = vector.load %arg5[%c0_8, %c0_9] : memref<128x64xbf16, #tpu.memory_space<vmem>>, vector<128x64xbf16>
    %cst_10 = arith.constant dense<0.000000e+00> : vector<128x64xf32>
    %11 = tpu.matmul %9, %10, %cst_10 {dimension_numbers = #tpu.dot_dimension_numbers<[1], [0], [0], [1], [0, 0, 1, 1], [], []>} : vector<128x128xbf16>, vector<128x64xbf16>, vector<128x64xf32> -> vector<128x64xf32>
    %12 = vector.extract_strided_slice %6 {offsets = [0, 0], sizes = [128, 32], strides = [1, 1]} : vector<128x96xf32> to vector<128x32xf32>
    %13 = vector.extract_strided_slice %11 {offsets = [0, 0], sizes = [128, 32], strides = [1, 1]} : vector<128x64xf32> to vector<128x32xf32>
    %14 = arith.addf %12, %13 : vector<128x32xf32>
    %c0_11 = arith.constant 0 : index
    %c0_12 = arith.constant 0 : index
    %15 = vector.load %arg6[%c0_11, %c0_12] : memref<128x96xf32, #tpu.memory_space<vmem>>, vector<128x32xf32>
    tpu.vector_store %arg6[%c0_11, %c0_12], %14 {strides = array<i32>} : memref<128x96xf32, #tpu.memory_space<vmem>>, vector<128x32xf32>,
    %16 = vector.extract_strided_slice %6 {offsets = [0, 32], sizes = [128, 32], strides = [1, 1]} : vector<128x96xf32> to vector<128x32xf32>
    %c0_13 = arith.constant 0 : index
    %c32 = arith.constant 32 : index
    %17 = vector.load %arg6[%c0_13, %c32] : memref<128x96xf32, #tpu.memory_space<vmem>>, vector<128x32xf32>
    tpu.vector_store %arg6[%c0_13, %c32], %16 {strides = array<i32>} : memref<128x96xf32, #tpu.memory_space<vmem>>, vector<128x32xf32>,
    %18 = vector.extract_strided_slice %6 {offsets = [0, 64], sizes = [128, 32], strides = [1, 1]} : vector<128x96xf32> to vector<128x32xf32>
    %19 = vector.extract_strided_slice %11 {offsets = [0, 32], sizes = [128, 32], strides = [1, 1]} : vector<128x64xf32> to vector<128x32xf32>
    %20 = arith.addf %18, %19 : vector<128x32xf32>
    %c0_14 = arith.constant 0 : index
    %c64 = arith.constant 64 : index
    %21 = vector.load %arg6[%c0_14, %c64] : memref<128x96xf32, #tpu.memory_space<vmem>>, vector<128x32xf32>
    tpu.vector_store %arg6[%c0_14, %c64], %20 {strides = array<i32>} : memref<128x96xf32, #tpu.memory_space<vmem>>, vector<128x32xf32>,
    return
  }
  func.func @transform_0(%arg0: i32) -> (i32, i32) {
    %c0_i32 = arith.constant 0 : i32
    %c0_i32_0 = arith.constant 0 : i32
    return %arg0, %c0_i32 : i32, i32
  }
  func.func @transform_1(%arg0: i32) -> (i32, i32) {
    %c0_i32 = arith.constant 0 : i32
    %c0_i32_0 = arith.constant 0 : i32
    %c0_i32_1 = arith.constant 0 : i32
    return %c0_i32, %c0_i32_0 : i32, i32
  }
  func.func @transform_2(%arg0: i32) -> (i32, i32) {
    %c0_i32 = arith.constant 0 : i32
    %c0_i32_0 = arith.constant 0 : i32
    %c0_i32_1 = arith.constant 0 : i32
    return %c0_i32, %c0_i32_0 : i32, i32
  }
  func.func @transform_3(%arg0: i32) -> (i32, i32) {
    %c0_i32 = arith.constant 0 : i32
    %c0_i32_0 = arith.constant 0 : i32
    %c0_i32_1 = arith.constant 0 : i32
    return %c0_i32, %c0_i32_0 : i32, i32
  }
  func.func @transform_4(%arg0: i32) -> (i32, i32) {
    %c0_i32 = arith.constant 0 : i32
    %c0_i32_0 = arith.constant 0 : i32
    %c0_i32_1 = arith.constant 0 : i32
    return %c0_i32, %c0_i32_0 : i32, i32
  }
  func.func @transform_5(%arg0: i32) -> (i32, i32) {
    %c0_i32 = arith.constant 0 : i32
    %c0_i32_0 = arith.constant 0 : i32
    return %arg0, %c0_i32 : i32, i32
  }
}

</mosaic_0001>

<llo_original>
// kernel: tpu_custom_call.1
$region0: #{tpu_custom_call.1}
  #allocation0 [shape = 'u32[]', space=smem, size = 0x4, offset = 0x4, fixed_abs, tag = 'smem constant byte address 0x4 - core index']
  #allocation1 [shape = 'u32[72,128]{1,0:T(1,128)}', space=vmem, size = 0x9000, scoped, tag = 'internal scratch']
  %s0 = inlined_call_operand.vmem [shape: f32[128,32], index: 0, kind: input, shape index: {}]
  %s1 = inlined_call_operand.vmem [shape: bf16[32,96], index: 1, kind: input, shape index: {}]
  %s2 = inlined_call_operand.vmem [shape: bf16[32,128], index: 2, kind: input, shape index: {}]
  %s3 = inlined_call_operand.vmem [shape: f32[1,96], index: 3, kind: input, shape index: {}]
  %s4 = inlined_call_operand.vmem [shape: bf16[128,64], index: 4, kind: input, shape index: {}]
  %s5 = inlined_call_operand.vmem [shape: f32[128,96], index: 5, kind: output, shape index: {}]
  %s6 = sld [smem:[#allocation0]]
  $region30: #{tpu_custom_call.1} parent=0
    _
  %s8 = ssub.s32 1, %s6
  %s9 = scalar_select 0, %s8, %s6
  // Predicated region
  $region2: #{tpu_custom_call.1} parent=0 // pred_check
    _
  $region3: #{tpu_custom_call.1} parent=0 // pred_check_branch
    %11 = sbr.rel (0) target = $region5
  $region4: #{tpu_custom_call.1} parent=0 // pred_region
    _
  $region5: #{tpu_custom_call.1} parent=0 // pred_fallthru
    _
  // Predicated region
  $region6: #{tpu_custom_call.1} parent=0 // pred_check
    _
  $region7: #{tpu_custom_call.1} parent=0 // pred_check_branch
    %13 = sbr.rel (0) target = $region9
  $region8: #{tpu_custom_call.1} parent=0 // pred_region
    _
  $region9: #{tpu_custom_call.1} parent=0 // pred_fallthru
    _
  // Predicated region
  $region10: #{tpu_custom_call.1} parent=0 // pred_check
    _
  $region11: #{tpu_custom_call.1} parent=0 // pred_check_branch
    %15 = sbr.rel (0) target = $region13
  $region12: #{tpu_custom_call.1} parent=0 // pred_region
    _
  $region13: #{tpu_custom_call.1} parent=0 // pred_fallthru
    _
  // Predicated region
  $region14: #{tpu_custom_call.1} parent=0 // pred_check
    _
  $region15: #{tpu_custom_call.1} parent=0 // pred_check_branch
    %17 = sbr.rel (0) target = $region17
  $region16: #{tpu_custom_call.1} parent=0 // pred_region
    _
  $region17: #{tpu_custom_call.1} parent=0 // pred_fallthru
    _
  // Predicated region
  $region18: #{tpu_custom_call.1} parent=0 // pred_check
    _
  $region19: #{tpu_custom_call.1} parent=0 // pred_check_branch
    %19 = sbr.rel (0) target = $region21
  $region20: #{tpu_custom_call.1} parent=0 // pred_region
    _
  $region21: #{tpu_custom_call.1} parent=0 // pred_fallthru
    _
  %v21 = vld [vmem:[%s0] sm:$0xff]
  %v22 = vld [vmem:[%s0 + $0x8] sm:$0xff]
  %v23 = vld [vmem:[%s0 + $0x10] sm:$0xff]
  %v24 = vld [vmem:[%s0 + $0x18] sm:$0xff]
  %v25 = vld [vmem:[%s0 + $0x20] sm:$0xff]
  %v26 = vld [vmem:[%s0 + $0x28] sm:$0xff]
  %v27 = vld [vmem:[%s0 + $0x30] sm:$0xff]
  %v28 = vld [vmem:[%s0 + $0x38] sm:$0xff]
  %v29 = vld [vmem:[%s0 + $0x40] sm:$0xff]
  %v30 = vld [vmem:[%s0 + $0x48] sm:$0xff]
  %v31 = vld [vmem:[%s0 + $0x50] sm:$0xff]
  %v32 = vld [vmem:[%s0 + $0x58] sm:$0xff]
  %v33 = vld [vmem:[%s0 + $0x60] sm:$0xff]
  %v34 = vld [vmem:[%s0 + $0x68] sm:$0xff]
  %v35 = vld [vmem:[%s0 + $0x70] sm:$0xff]
  %v36 = vld [vmem:[%s0 + $0x78] sm:$0xff]
  %v37 = vpack.c.bf16 %v22, %v21
  %v38 = vpack.c.bf16 %v24, %v23
  %v39 = vpack.c.bf16 %v26, %v25
  %v40 = vpack.c.bf16 %v28, %v27
  %v41 = vpack.c.bf16 %v30, %v29
  %v42 = vpack.c.bf16 %v32, %v31
  %v43 = vpack.c.bf16 %v34, %v33
  %v44 = vpack.c.bf16 %v36, %v35
  %v45 = vld [vmem:[%s1] sm:$0xf]
  %v46 = vld [vmem:[%s1 + $0x4] sm:$0xf]
  %v47 = vld [vmem:[%s1 + $0x8] sm:$0xf]
  %v48 = vld [vmem:[%s1 + $0xc] sm:$0xf]
  %v49 = vld [vmem:[%s3] sm:$0x1]
  %v51 = vperm.slane %v49, 0
  %v57 = vunpack.c.l.b16 %v45
  %v58 = vunpack.c.l.b16 %v46
  %v59 = vunpack.c.l.b16 %v47
  %v60 = vunpack.c.l.b16 %v48
  %v61 = vpack.c.b16 %v58, %v57
  %v62 = vpack.c.b16 %v60, %v59
  %vm65 = vcmask 261120
  %v67 = vsel %vm65, %v37, 0
  %v70 = vsel %vm65, %v38, 0
  %v73 = vsel %vm65, %v39, 0
  %v76 = vsel %vm65, %v40, 0
  %v79 = vsel %vm65, %v41, 0
  %v82 = vsel %vm65, %v42, 0
  %v85 = vsel %vm65, %v43, 0
  %v88 = vsel %vm65, %v44, 0
  %90 = vmatpush.bf16.msra.mxu0 0
  %91 = vmatpush.bf16.msra.mxu0 0
  %92 = vmatpush.bf16.msra.mxu0 0
  %93 = vmatpush.bf16.msra.mxu0 0
  %94 = vmatpush.bf16.msra.mxu0 0
  %95 = vmatpush.bf16.msra.mxu0 0
  %96 = vmatpush.bf16.msra.mxu0 %v62
  %97 = vmatpush.bf16.msra.mxu0 %v61
  %98 = vmatmul.bf16.gmra.mxu0 %v67
  %v99 = vpop.f32.mrf.mxu0
  %v100 = vadd.f32 %v51, %v99
  %v101 = vpop.f32.mrf.mxu0
  %v102 = vadd.f32 %v51, %v101
  %103 = vmatmul.bf16.gmra.mxu0 %v70
  %v104 = vpop.f32.mrf.mxu0
  %v105 = vadd.f32 %v51, %v104
  %v106 = vpop.f32.mrf.mxu0
  %v107 = vadd.f32 %v51, %v106
  %108 = vmatmul.bf16.gmra.mxu0 %v73
  %v109 = vpop.f32.mrf.mxu0
  %v110 = vadd.f32 %v51, %v109
  %v111 = vpop.f32.mrf.mxu0
  %v112 = vadd.f32 %v51, %v111
  %113 = vmatmul.bf16.gmra.mxu0 %v76
  %v114 = vpop.f32.mrf.mxu0
  %v115 = vadd.f32 %v51, %v114
  %v116 = vpop.f32.mrf.mxu0
  %v117 = vadd.f32 %v51, %v116
  %118 = vmatmul.bf16.gmra.mxu0 %v79
  %v119 = vpop.f32.mrf.mxu0
  %v120 = vadd.f32 %v51, %v119
  %v121 = vpop.f32.mrf.mxu0
  %v122 = vadd.f32 %v51, %v121
  %123 = vmatmul.bf16.gmra.mxu0 %v82
  %v124 = vpop.f32.mrf.mxu0
  %v125 = vadd.f32 %v51, %v124
  %v126 = vpop.f32.mrf.mxu0
  %v127 = vadd.f32 %v51, %v126
  %128 = vmatmul.bf16.gmra.mxu0 %v85
  %v129 = vpop.f32.mrf.mxu0
  %v130 = vadd.f32 %v51, %v129
  %v131 = vpop.f32.mrf.mxu0
  %v132 = vadd.f32 %v51, %v131
  %133 = vmatmul.bf16.gmra.mxu0 %v88
  %v134 = vpop.f32.mrf.mxu0
  %v135 = vadd.f32 %v51, %v134
  %v136 = vpop.f32.mrf.mxu0
  %v137 = vadd.f32 %v51, %v136
  %138 = vdwg.mxu0
  %v139 = vld [vmem:[%s2] sm:$0xf]
  %v140 = vld [vmem:[%s2 + $0x4] sm:$0xf]
  %v141 = vld [vmem:[%s2 + $0x8] sm:$0xf]
  %v142 = vld [vmem:[%s2 + $0xc] sm:$0xf]
  %v147 = vunpack.c.l.b16 %v139
  %v148 = vunpack.c.l.b16 %v140
  %v149 = vunpack.c.l.b16 %v141
  %v150 = vunpack.c.l.b16 %v142
  %v151 = vpack.c.b16 %v148, %v147
  %v152 = vpack.c.b16 %v150, %v149
  %155 = vmatpush.bf16.msra.mxu0 0
  %156 = vmatpush.bf16.msra.mxu0 0
  %157 = vmatpush.bf16.msra.mxu0 0
  %158 = vmatpush.bf16.msra.mxu0 0
  %159 = vmatpush.bf16.msra.mxu0 0
  %160 = vmatpush.bf16.msra.mxu0 0
  %161 = vmatpush.bf16.msra.mxu0 %v152
  %162 = vmatpush.bf16.msra.mxu0 %v151
  %163 = vmatmul.bf16.gmra.mxu0 %v67
  %v164 = vpop.f32.mrf.mxu0
  %v165 = vadd.f32 0.0, %v164
  %v166 = vpop.f32.mrf.mxu0
  %v167 = vadd.f32 0.0, %v166
  %168 = vmatmul.bf16.gmra.mxu0 %v70
  %v169 = vpop.f32.mrf.mxu0
  %v170 = vadd.f32 0.0, %v169
  %v171 = vpop.f32.mrf.mxu0
  %v172 = vadd.f32 0.0, %v171
  %173 = vmatmul.bf16.gmra.mxu0 %v73
  %v174 = vpop.f32.mrf.mxu0
  %v175 = vadd.f32 0.0, %v174
  %v176 = vpop.f32.mrf.mxu0
  %v177 = vadd.f32 0.0, %v176
  %178 = vmatmul.bf16.gmra.mxu0 %v76
  %v179 = vpop.f32.mrf.mxu0
  %v180 = vadd.f32 0.0, %v179
  %v181 = vpop.f32.mrf.mxu0
  %v182 = vadd.f32 0.0, %v181
  %183 = vmatmul.bf16.gmra.mxu0 %v79
  %v184 = vpop.f32.mrf.mxu0
  %v185 = vadd.f32 0.0, %v184
  %v186 = vpop.f32.mrf.mxu0
  %v187 = vadd.f32 0.0, %v186
  %188 = vmatmul.bf16.gmra.mxu0 %v82
  %v189 = vpop.f32.mrf.mxu0
  %v190 = vadd.f32 0.0, %v189
  %v191 = vpop.f32.mrf.mxu0
  %v192 = vadd.f32 0.0, %v191
  %193 = vmatmul.bf16.gmra.mxu0 %v85
  %v194 = vpop.f32.mrf.mxu0
  %v195 = vadd.f32 0.0, %v194
  %v196 = vpop.f32.mrf.mxu0
  %v197 = vadd.f32 0.0, %v196
  %198 = vmatmul.bf16.gmra.mxu0 %v88
  %v199 = vpop.f32.mrf.mxu0
  %v200 = vadd.f32 0.0, %v199
  %v201 = vpop.f32.mrf.mxu0
  %v202 = vadd.f32 0.0, %v201
  %203 = vdwg.mxu0
  %v204 = vpack.c.bf16 %v167, %v165
  %v205 = vpack.c.bf16 %v172, %v170
  %v206 = vpack.c.bf16 %v177, %v175
  %v207 = vpack.c.bf16 %v182, %v180
  %v208 = vpack.c.bf16 %v187, %v185
  %v209 = vpack.c.bf16 %v192, %v190
  %v210 = vpack.c.bf16 %v197, %v195
  %v211 = vpack.c.bf16 %v202, %v200
  %v212 = vld [vmem:[%s4] sm:$0xf]
  %v213 = vld [vmem:[%s4 + $0x4] sm:$0xf]
  %v214 = vld [vmem:[%s4 + $0x8] sm:$0xf]
  %v215 = vld [vmem:[%s4 + $0xc] sm:$0xf]
  %v216 = vld [vmem:[%s4 + $0x10] sm:$0xf]
  %v217 = vld [vmem:[%s4 + $0x14] sm:$0xf]
  %v218 = vld [vmem:[%s4 + $0x18] sm:$0xf]
  %v219 = vld [vmem:[%s4 + $0x1c] sm:$0xf]
  %v220 = vld [vmem:[%s4 + $0x20] sm:$0xf]
  %v221 = vld [vmem:[%s4 + $0x24] sm:$0xf]
  %v222 = vld [vmem:[%s4 + $0x28] sm:$0xf]
  %v223 = vld [vmem:[%s4 + $0x2c] sm:$0xf]
  %v224 = vld [vmem:[%s4 + $0x30] sm:$0xf]
  %v225 = vld [vmem:[%s4 + $0x34] sm:$0xf]
  %v226 = vld [vmem:[%s4 + $0x38] sm:$0xf]
  %v227 = vld [vmem:[%s4 + $0x3c] sm:$0xf]
  %v244 = vunpack.c.l.b16 %v212
  %v245 = vunpack.c.l.b16 %v213
  %v246 = vunpack.c.l.b16 %v214
  %v247 = vunpack.c.l.b16 %v215
  %v248 = vunpack.c.l.b16 %v216
  %v249 = vunpack.c.l.b16 %v217
  %v250 = vunpack.c.l.b16 %v218
  %v251 = vunpack.c.l.b16 %v219
  %v252 = vunpack.c.l.b16 %v220
  %v253 = vunpack.c.l.b16 %v221
  %v254 = vunpack.c.l.b16 %v222
  %v255 = vunpack.c.l.b16 %v223
  %v256 = vunpack.c.l.b16 %v224
  %v257 = vunpack.c.l.b16 %v225
  %v258 = vunpack.c.l.b16 %v226
  %v259 = vunpack.c.l.b16 %v227
  %v260 = vpack.c.b16 %v245, %v244
  %v261 = vpack.c.b16 %v247, %v246
  %v262 = vpack.c.b16 %v249, %v248
  %v263 = vpack.c.b16 %v251, %v250
  %v264 = vpack.c.b16 %v253, %v252
  %v265 = vpack.c.b16 %v255, %v254
  %v266 = vpack.c.b16 %v257, %v256
  %v267 = vpack.c.b16 %v259, %v258
  %276 = vmatpush.bf16.msra.mxu0 %v267
  %277 = vmatpush.bf16.msra.mxu0 %v266
  %278 = vmatpush.bf16.msra.mxu0 %v265
  %279 = vmatpush.bf16.msra.mxu0 %v264
  %280 = vmatpush.bf16.msra.mxu0 %v263
  %281 = vmatpush.bf16.msra.mxu0 %v262
  %282 = vmatpush.bf16.msra.mxu0 %v261
  %283 = vmatpush.bf16.msra.mxu0 %v260
  %284 = vmatmul.bf16.gmra.mxu0 %v204
  %v285 = vpop.f32.mrf.mxu0
  %v286 = vadd.f32 0.0, %v285
  %v287 = vpop.f32.mrf.mxu0
  %v288 = vadd.f32 0.0, %v287
  %289 = vmatmul.bf16.gmra.mxu0 %v205
  %v290 = vpop.f32.mrf.mxu0
  %v291 = vadd.f32 0.0, %v290
  %v292 = vpop.f32.mrf.mxu0
  %v293 = vadd.f32 0.0, %v292
  %294 = vmatmul.bf16.gmra.mxu0 %v206
  %v295 = vpop.f32.mrf.mxu0
  %v296 = vadd.f32 0.0, %v295
  %v297 = vpop.f32.mrf.mxu0
  %v298 = vadd.f32 0.0, %v297
  %299 = vmatmul.bf16.gmra.mxu0 %v207
  %v300 = vpop.f32.mrf.mxu0
  %v301 = vadd.f32 0.0, %v300
  %v302 = vpop.f32.mrf.mxu0
  %v303 = vadd.f32 0.0, %v302
  %304 = vmatmul.bf16.gmra.mxu0 %v208
  %v305 = vpop.f32.mrf.mxu0
  %v306 = vadd.f32 0.0, %v305
  %v307 = vpop.f32.mrf.mxu0
  %v308 = vadd.f32 0.0, %v307
  %309 = vmatmul.bf16.gmra.mxu0 %v209
  %v310 = vpop.f32.mrf.mxu0
  %v311 = vadd.f32 0.0, %v310
  %v312 = vpop.f32.mrf.mxu0
  %v313 = vadd.f32 0.0, %v312
  %314 = vmatmul.bf16.gmra.mxu0 %v210
  %v315 = vpop.f32.mrf.mxu0
  %v316 = vadd.f32 0.0, %v315
  %v317 = vpop.f32.mrf.mxu0
  %v318 = vadd.f32 0.0, %v317
  %319 = vmatmul.bf16.gmra.mxu0 %v211
  %v320 = vpop.f32.mrf.mxu0
  %v321 = vadd.f32 0.0, %v320
  %v322 = vpop.f32.mrf.mxu0
  %v323 = vadd.f32 0.0, %v322
  %324 = vdwg.mxu0
  %v325 = vadd.f32 %v100, %v286
  %v326 = vadd.f32 %v102, %v288
  %v327 = vadd.f32 %v105, %v291
  %v328 = vadd.f32 %v107, %v293
  %v329 = vadd.f32 %v110, %v296
  %v330 = vadd.f32 %v112, %v298
  %v331 = vadd.f32 %v115, %v301
  %v332 = vadd.f32 %v117, %v303
  %v333 = vadd.f32 %v120, %v306
  %v334 = vadd.f32 %v122, %v308
  %v335 = vadd.f32 %v125, %v311
  %v336 = vadd.f32 %v127, %v313
  %v337 = vadd.f32 %v130, %v316
  %v338 = vadd.f32 %v132, %v318
  %v339 = vadd.f32 %v135, %v321
  %v340 = vadd.f32 %v137, %v323
  %341 = vst.msk [vmem:[%s5] sm:$0xff] %vm65, %v325
  %342 = vst.msk [vmem:[%s5 + $0x8] sm:$0xff] %vm65, %v326
  %343 = vst.msk [vmem:[%s5 + $0x10] sm:$0xff] %vm65, %v327
  %344 = vst.msk [vmem:[%s5 + $0x18] sm:$0xff] %vm65, %v328
  %345 = vst.msk [vmem:[%s5 + $0x20] sm:$0xff] %vm65, %v329
  %346 = vst.msk [vmem:[%s5 + $0x28] sm:$0xff] %vm65, %v330
  %347 = vst.msk [vmem:[%s5 + $0x30] sm:$0xff] %vm65, %v331
  %348 = vst.msk [vmem:[%s5 + $0x38] sm:$0xff] %vm65, %v332
  %349 = vst.msk [vmem:[%s5 + $0x40] sm:$0xff] %vm65, %v333
  %350 = vst.msk [vmem:[%s5 + $0x48] sm:$0xff] %vm65, %v334
  %351 = vst.msk [vmem:[%s5 + $0x50] sm:$0xff] %vm65, %v335
  %352 = vst.msk [vmem:[%s5 + $0x58] sm:$0xff] %vm65, %v336
  %353 = vst.msk [vmem:[%s5 + $0x60] sm:$0xff] %vm65, %v337
  %354 = vst.msk [vmem:[%s5 + $0x68] sm:$0xff] %vm65, %v338
  %355 = vst.msk [vmem:[%s5 + $0x70] sm:$0xff] %vm65, %v339
  %356 = vst.msk [vmem:[%s5 + $0x78] sm:$0xff] %vm65, %v340
  %vm357 = vcmask 523520
  %358 = vst.msk [vmem:[%s5] sm:$0xff] %vm357, %v100
  %359 = vst.msk [vmem:[%s5 + $0x8] sm:$0xff] %vm357, %v102
  %360 = vst.msk [vmem:[%s5 + $0x10] sm:$0xff] %vm357, %v105
  %361 = vst.msk [vmem:[%s5 + $0x18] sm:$0xff] %vm357, %v107
  %362 = vst.msk [vmem:[%s5 + $0x20] sm:$0xff] %vm357, %v110
  %363 = vst.msk [vmem:[%s5 + $0x28] sm:$0xff] %vm357, %v112
  %364 = vst.msk [vmem:[%s5 + $0x30] sm:$0xff] %vm357, %v115
  %365 = vst.msk [vmem:[%s5 + $0x38] sm:$0xff] %vm357, %v117
  %366 = vst.msk [vmem:[%s5 + $0x40] sm:$0xff] %vm357, %v120
  %367 = vst.msk [vmem:[%s5 + $0x48] sm:$0xff] %vm357, %v122
  %368 = vst.msk [vmem:[%s5 + $0x50] sm:$0xff] %vm357, %v125
  %369 = vst.msk [vmem:[%s5 + $0x58] sm:$0xff] %vm357, %v127
  %370 = vst.msk [vmem:[%s5 + $0x60] sm:$0xff] %vm357, %v130
  %371 = vst.msk [vmem:[%s5 + $0x68] sm:$0xff] %vm357, %v132
  %372 = vst.msk [vmem:[%s5 + $0x70] sm:$0xff] %vm357, %v135
  %373 = vst.msk [vmem:[%s5 + $0x78] sm:$0xff] %vm357, %v137
  %390 = vrot.lane.b32.xlu0 %v286, 32
  %v391 = vpop.permute.xlu0 %390
  %392 = vrot.lane.b32.xlu0 %v288, 32
  %v393 = vpop.permute.xlu0 %392
  %394 = vrot.lane.b32.xlu0 %v291, 32
  %v395 = vpop.permute.xlu0 %394
  %396 = vrot.lane.b32.xlu0 %v293, 32
  %v397 = vpop.permute.xlu0 %396
  %398 = vrot.lane.b32.xlu0 %v296, 32
  %v399 = vpop.permute.xlu0 %398
  %400 = vrot.lane.b32.xlu0 %v298, 32
  %v401 = vpop.permute.xlu0 %400
  %402 = vrot.lane.b32.xlu0 %v301, 32
  %v403 = vpop.permute.xlu0 %402
  %404 = vrot.lane.b32.xlu0 %v303, 32
  %v405 = vpop.permute.xlu0 %404
  %406 = vrot.lane.b32.xlu0 %v306, 32
  %v407 = vpop.permute.xlu0 %406
  %408 = vrot.lane.b32.xlu0 %v308, 32
  %v409 = vpop.permute.xlu0 %408
  %410 = vrot.lane.b32.xlu0 %v311, 32
  %v411 = vpop.permute.xlu0 %410
  %412 = vrot.lane.b32.xlu0 %v313, 32
  %v413 = vpop.permute.xlu0 %412
  %414 = vrot.lane.b32.xlu0 %v316, 32
  %v415 = vpop.permute.xlu0 %414
  %416 = vrot.lane.b32.xlu0 %v318, 32
  %v417 = vpop.permute.xlu0 %416
  %418 = vrot.lane.b32.xlu0 %v321, 32
  %v419 = vpop.permute.xlu0 %418
  %420 = vrot.lane.b32.xlu0 %v323, 32
  %v421 = vpop.permute.xlu0 %420
  %v438 = vadd.f32 %v100, %v391
  %v439 = vadd.f32 %v102, %v393
  %v440 = vadd.f32 %v105, %v395
  %v441 = vadd.f32 %v107, %v397
  %v442 = vadd.f32 %v110, %v399
  %v443 = vadd.f32 %v112, %v401
  %v444 = vadd.f32 %v115, %v403
  %v445 = vadd.f32 %v117, %v405
  %v446 = vadd.f32 %v120, %v407
  %v447 = vadd.f32 %v122, %v409
  %v448 = vadd.f32 %v125, %v411
  %v449 = vadd.f32 %v127, %v413
  %v450 = vadd.f32 %v130, %v415
  %v451 = vadd.f32 %v132, %v417
  %v452 = vadd.f32 %v135, %v419
  %v453 = vadd.f32 %v137, %v421
  %vm454 = vcmask 785920
  %455 = vst.msk [vmem:[%s5] sm:$0xff] %vm454, %v438
  %456 = vst.msk [vmem:[%s5 + $0x8] sm:$0xff] %vm454, %v439
  %457 = vst.msk [vmem:[%s5 + $0x10] sm:$0xff] %vm454, %v440
  %458 = vst.msk [vmem:[%s5 + $0x18] sm:$0xff] %vm454, %v441
  %459 = vst.msk [vmem:[%s5 + $0x20] sm:$0xff] %vm454, %v442
  %460 = vst.msk [vmem:[%s5 + $0x28] sm:$0xff] %vm454, %v443
  %461 = vst.msk [vmem:[%s5 + $0x30] sm:$0xff] %vm454, %v444
  %462 = vst.msk [vmem:[%s5 + $0x38] sm:$0xff] %vm454, %v445
  %463 = vst.msk [vmem:[%s5 + $0x40] sm:$0xff] %vm454, %v446
  %464 = vst.msk [vmem:[%s5 + $0x48] sm:$0xff] %vm454, %v447
  %465 = vst.msk [vmem:[%s5 + $0x50] sm:$0xff] %vm454, %v448
  %466 = vst.msk [vmem:[%s5 + $0x58] sm:$0xff] %vm454, %v449
  %467 = vst.msk [vmem:[%s5 + $0x60] sm:$0xff] %vm454, %v450
  %468 = vst.msk [vmem:[%s5 + $0x68] sm:$0xff] %vm454, %v451
  %469 = vst.msk [vmem:[%s5 + $0x70] sm:$0xff] %vm454, %v452
  %470 = vst.msk [vmem:[%s5 + $0x78] sm:$0xff] %vm454, %v453
  // Predicated region
  $region22: #{tpu_custom_call.1} parent=0 // pred_check
    _
  $region23: #{tpu_custom_call.1} parent=0 // pred_check_branch
    %472 = sbr.rel (0) target = $region25
  $region24: #{tpu_custom_call.1} parent=0 // pred_region
    _
  $region25: #{tpu_custom_call.1} parent=0 // pred_fallthru
    _
  // Predicated region
  $region26: #{tpu_custom_call.1} parent=0 // pred_check
    _
  $region27: #{tpu_custom_call.1} parent=0 // pred_check_branch
    %474 = sbr.rel (0) target = $region29
  $region28: #{tpu_custom_call.1} parent=0 // pred_region
    _
  $region29: #{tpu_custom_call.1} parent=0 // pred_fallthru
    _

</llo_original>
